<compile_context>
chip_gen: v7x
topology: tpu7x:2x2x1
jax: 0.10.0
libtpu: 0.0.40
codegen_flags: <defaults>
</compile_context>

<pallas_src>
import jax
import jax.numpy as jnp
from jax.experimental import pallas as pl
from jax.experimental.pallas import tpu as pltpu


def _pick_tile_n(half, cap=1024):
    """Largest multiple of 128 that divides `half`, capped at `cap` lanes."""
    best = None
    d = 128
    while d <= min(half, cap):
        if half % d == 0:
            best = d
        d += 128
    return best


def _pick_tile_b(batch, cap=256):
    if batch < 8:
        return batch
    return min(cap, (batch // 8) * 8)


def _make_main_kernel(batch, tb, tn, need_row_mask):
    def kernel(fl_ref, fr_ref, out_ref, acc_ref):
        j = pl.program_id(1)

        @pl.when(j == 0)
        def _init():
            acc_ref[...] = jnp.zeros_like(acc_ref)

        fl = fl_ref[...].astype(jnp.float32)
        fr = fr_ref[...].astype(jnp.float32)
        # log(1 + exp(d)) == log1p(exp(d)); same EUP op count, better precision.
        vals = jnp.log1p(jnp.exp(fr - fl))

        if need_row_mask:
            i = pl.program_id(0)
            rows = i * tb + jax.lax.broadcasted_iota(jnp.int32, (tb, tn), 0)
            vals = jnp.where(rows < batch, vals, 0.0)

        # Pure-VPU per-step accumulation; all cross-sublane reduction deferred
        # to the finalize epilogue below.
        acc_ref[...] += vals

        @pl.when(j == pl.num_programs(1) - 1)
        def _finalize():
            out_ref[...] = jnp.sum(
                acc_ref[...], axis=0, keepdims=True
            ).reshape(1, 1, tn)

    return kernel


def closs_sigmoid(f, num_stocks):
    """f: (batch, num_stocks) array. Returns scalar float32 mean loss."""
    batch, ns = f.shape
    assert ns == num_stocks
    assert num_stocks % 2 == 0, "num_stocks must be even (as in the torch ref)"
    half = num_stocks // 2

    tn = _pick_tile_n(half)
    if tn is None:
        # half not a multiple of 128: fall back to full-row blocks.
        return _closs_sigmoid_fullrow(f, batch, num_stocks, half)

    tb = _pick_tile_b(batch)
    nb = pl.cdiv(batch, tb)
    nc = half // tn
    need_row_mask = (batch % tb) != 0

    kernel = _make_main_kernel(batch, tb, tn, need_row_mask)

    partials = pl.pallas_call(
        kernel,
        out_shape=jax.ShapeDtypeStruct((nb, 1, tn), jnp.float32),
        grid=(nb, nc),
        in_specs=[
            # Left half = column blocks [0, nc); right half = [nc, 2*nc).
            # Both specs read the SAME HBM buffer (f is passed twice), so no
            # host-side split copies are materialized.
            pl.BlockSpec((tb, tn), lambda i, j: (i, j)),
            pl.BlockSpec((tb, tn), lambda i, j: (i, j + nc)),
        ],
        out_specs=pl.BlockSpec((1, 1, tn), lambda i, j: (i, 0, 0)),
        scratch_shapes=[pltpu.VMEM((tb, tn), jnp.float32)],
        compiler_params=pltpu.CompilerParams(
            dimension_semantics=("parallel", "arbitrary")),
        cost_estimate=pl.CostEstimate(
            flops=5 * batch * half,
            transcendentals=2 * batch * half,
            bytes_accessed=4 * batch * num_stocks + 4 * nb * tn),
    )(f, f)

    # Exact mean: sum of lane-dense partial sums / true element count.
    return jnp.sum(partials) / (batch * half)


def _closs_sigmoid_fullrow(f, batch, num_stocks, half):
    # TODO(synk): fallback for half % 128 != 0 loads whole rows and slices at
    # an unaligned lane offset in-kernel; slower than the tiled main path.
    tb = _pick_tile_b(batch, cap=128)
    nb = pl.cdiv(batch, tb)
    need_row_mask = (batch % tb) != 0

    def kernel(f_ref, out_ref):
        x = f_ref[...].astype(jnp.float32)
        vals = jnp.log1p(jnp.exp(x[:, half:num_stocks] - x[:, :half]))
        if need_row_mask:
            i = pl.program_id(0)
            rows = i * tb + jax.lax.broadcasted_iota(jnp.int32, (tb, half), 0)
            vals = jnp.where(rows < batch, vals, 0.0)
        out_ref[0, 0] = jnp.sum(vals)

    partials = pl.pallas_call(
        kernel,
        out_shape=jax.ShapeDtypeStruct((nb, 1), jnp.float32),
        grid=(nb,),
        in_specs=[pl.BlockSpec((tb, num_stocks), lambda i: (i, 0))],
        out_specs=pl.BlockSpec((1, 1), lambda i: (i, 0),
                               memory_space=pltpu.SMEM),
        compiler_params=pltpu.CompilerParams(
            dimension_semantics=("parallel",)),
    )(f)
    return jnp.sum(partials) / (batch * half)


def _reference(f, num_stocks):
    half = num_stocks // 2
    return jnp.mean(jnp.log(1.0 + jnp.exp(f[:, half:] - f[:, :half])))


if __name__ == "__main__":
    key = jax.random.PRNGKey(0)
    k1, k2 = jax.random.split(key)

    # Case 1: small shape consistent with the module (batch=8, 256 stocks).
    b1, ns1 = 8, 256
    f1 = jax.random.normal(k1, (b1, ns1), dtype=jnp.float32)
    out1 = jax.block_until_ready(closs_sigmoid(f1, ns1))
    ref1 = _reference(f1, ns1)
    assert jnp.allclose(out1, ref1, rtol=1e-5, atol=1e-5), (out1, ref1)

    # Case 2: exercises multi-block grid (batch + column blocks), the ragged-
    # batch row mask, and the accumulate/finalize epilogue.
    b2, ns2 = 12, 2304   # half = 1152 -> tn = 384, nc = 3; tb = 8, nb = 2
    f2 = jax.random.normal(k2, (b2, ns2), dtype=jnp.float32)
    out2 = jax.block_until_ready(closs_sigmoid(f2, ns2))
    ref2 = _reference(f2, ns2)
    assert jnp.allclose(out2, ref2, rtol=1e-5, atol=1e-5), (out2, ref2)

    print("KERNEL_OK")
</pallas_src>

<mosaic_0001>
module attributes {stable_mosaic.version = 11 : i64} {
  func.func @kernel(%arg0: i32, %arg1: i32, %arg2: memref<8x128xf32, #tpu.memory_space<vmem>>, %arg3: memref<8x128xf32, #tpu.memory_space<vmem>>, %arg4: memref<1x1x128xf32, #tpu.memory_space<vmem>>, %arg5: memref<8x128xf32, #tpu.memory_space<vmem>>) attributes {dimension_semantics = [#tpu.dimension_semantics<parallel>, #tpu.dimension_semantics<arbitrary>], iteration_bounds = array<i64: 1, 1>, scalar_prefetch = 0 : i64, scratch_operands = 1 : i64, tpu.core_type = #tpu.core_type<tc>, window_params = [{transform_indices = @transform_0, window_bounds = array<i64: 8, 128>}, {transform_indices = @transform_1, window_bounds = array<i64: 8, 128>}, {transform_indices = @transform_2, window_bounds = array<i64: 1, 1, 128>}]} {
    %c0_i32 = arith.constant 0 : i32
    %0 = arith.cmpi eq, %arg1, %c0_i32 : i32
    %1 = arith.extui %0 : i1 to i32
    %c0_i32_0 = arith.constant 0 : i32
    %2 = arith.cmpi ne, %1, %c0_i32_0 : i32
    scf.if %2 {
      %cst = arith.constant 0.000000e+00 : f32
      %14 = vector.broadcast %cst : f32 to vector<8x128xf32>
      %c0_10 = arith.constant 0 : index
      %c0_11 = arith.constant 0 : index
      %15 = vector.load %arg5[%c0_10, %c0_11] : memref<8x128xf32, #tpu.memory_space<vmem>>, vector<8x128xf32>
      tpu.vector_store %arg5[%c0_10, %c0_11], %14 {strides = array<i32>} : memref<8x128xf32, #tpu.memory_space<vmem>>, vector<8x128xf32>,
    } else {
    }
    %c0 = arith.constant 0 : index
    %c0_1 = arith.constant 0 : index
    %3 = vector.load %arg2[%c0, %c0_1] : memref<8x128xf32, #tpu.memory_space<vmem>>, vector<8x128xf32>
    %c0_2 = arith.constant 0 : index
    %c0_3 = arith.constant 0 : index
    %4 = vector.load %arg3[%c0_2, %c0_3] : memref<8x128xf32, #tpu.memory_space<vmem>>, vector<8x128xf32>
    %5 = arith.subf %4, %3 : vector<8x128xf32>
    %6 = math.exp %5 : vector<8x128xf32>
    %7 = math.log1p %6 : vector<8x128xf32>
    %c0_4 = arith.constant 0 : index
    %c0_5 = arith.constant 0 : index
    %8 = vector.load %arg5[%c0_4, %c0_5] : memref<8x128xf32, #tpu.memory_space<vmem>>, vector<8x128xf32>
    %9 = arith.addf %8, %7 : vector<8x128xf32>
    %c0_6 = arith.constant 0 : index
    %c0_7 = arith.constant 0 : index
    %10 = vector.load %arg5[%c0_6, %c0_7] : memref<8x128xf32, #tpu.memory_space<vmem>>, vector<8x128xf32>
    tpu.vector_store %arg5[%c0_6, %c0_7], %9 {strides = array<i32>} : memref<8x128xf32, #tpu.memory_space<vmem>>, vector<8x128xf32>,
    %c0_i32_8 = arith.constant 0 : i32
    %11 = arith.cmpi eq, %arg1, %c0_i32_8 : i32
    %12 = arith.extui %11 : i1 to i32
    %c0_i32_9 = arith.constant 0 : i32
    %13 = arith.cmpi ne, %12, %c0_i32_9 : i32
    scf.if %13 {
      %c0_10 = arith.constant 0 : index
      %c0_11 = arith.constant 0 : index
      %14 = vector.load %arg5[%c0_10, %c0_11] : memref<8x128xf32, #tpu.memory_space<vmem>>, vector<8x128xf32>
      %cst = arith.constant dense<0.000000e+00> : vector<128xf32>
      %15 = vector.multi_reduction <add>, %14, %cst [0] : vector<8x128xf32> to vector<128xf32>
      %16 = vector.shape_cast %15 : vector<128xf32> to vector<1x128xf32>
      %17 = vector.shape_cast %16 : vector<1x128xf32> to vector<1x1x128xf32>
      %c0_12 = arith.constant 0 : index
      %c0_13 = arith.constant 0 : index
      %c0_14 = arith.constant 0 : index
      %18 = vector.load %arg4[%c0_12, %c0_13, %c0_14] : memref<1x1x128xf32, #tpu.memory_space<vmem>>, vector<1x1x128xf32>
      tpu.vector_store %arg4[%c0_12, %c0_13, %c0_14], %17 {strides = array<i32>} : memref<1x1x128xf32, #tpu.memory_space<vmem>>, vector<1x1x128xf32>,
    } else {
    }
    return
  }
  func.func @transform_0(%arg0: i32, %arg1: i32) -> (i32, i32) {
    %c0_i32 = arith.constant 0 : i32
    return %arg0, %arg1 : i32, i32
  }
  func.func @transform_1(%arg0: i32, %arg1: i32) -> (i32, i32) {
    %c1_i32 = arith.constant 1 : i32
    %0 = arith.addi %arg1, %c1_i32 : i32
    %c0_i32 = arith.constant 0 : i32
    return %arg0, %0 : i32, i32
  }
  func.func @transform_2(%arg0: i32, %arg1: i32) -> (i32, i32, i32) {
    %c0_i32 = arith.constant 0 : i32
    %c0_i32_0 = arith.constant 0 : i32
    %c0_i32_1 = arith.constant 0 : i32
    return %arg0, %c0_i32, %c0_i32_0 : i32, i32, i32
  }
}

</mosaic_0001>

<llo_original>
// kernel: tpu_custom_call.1
$region0: #{tpu_custom_call.1}
  #allocation0 [shape = 'u32[]', space=smem, size = 0x4, offset = 0x4, fixed_abs, tag = 'smem constant byte address 0x4 - core index']
  #allocation1 [shape = 'u32[144,128]{1,0:T(1,128)}', space=vmem, size = 0x12000, scoped, tag = 'internal scratch']
  #allocation2 [shape = 'f32[8,128]{1,0:T(8,128)}', space=vmem, size = 0x1000, scoped, tag = 'scratch operand']
  %s0 = inlined_call_operand.hbm [shape: f32[8,256], index: 0, kind: input, shape index: {}]
  %s1 = inlined_call_operand.hbm [shape: f32[8,256], index: 1, kind: input, shape index: {}]
  %s2 = inlined_call_operand.hbm [shape: f32[1,1,128], index: 2, kind: output, shape index: {}]
  %s3 = sld [smem:[#allocation0]]
  $region34: #{tpu_custom_call.1} parent=0
    _
  %s5 = ssub.s32 1, %s3
  %s6 = scalar_select 0, %s5, %s3
  $region1: #{tpu_custom_call.1} parent=0
    #allocation3 [shape = 'u8[4096]{0}', space=vmem, size = 0x1000, scoped, tag = 'input window, operand 0, single buffered']
    #allocation4 [shape = 's32[1]{0}', space=sflag, size = 0x4, scoped, tag = 'scoped memory for tpu_custom_call.1']
    #allocation5 [shape = 's32[1]{0}', space=sflag, size = 0x4, scoped, tag = 'scoped memory for tpu_custom_call.1']
    #allocation6 [shape = 'u8[4096]{0}', space=vmem, size = 0x1000, scoped, tag = 'input window, operand 1, single buffered']
    #allocation7 [shape = 's32[1]{0}', space=sflag, size = 0x4, scoped, tag = 'scoped memory for tpu_custom_call.1']
    #allocation8 [shape = 'u8[512]{0}', space=vmem, size = 0x400, scoped, tag = 'output window, operand 0, single buffered']
    %7 = vsyncpa [#allocation4], 0
    %8 = vsyncpa [#allocation7], 0
    %9 = vsyncpa [#allocation5], 0
    // Predicated region
    $region2: #{tpu_custom_call.1} parent=1 // pred_check
      _
    $region3: #{tpu_custom_call.1} parent=1 // pred_check_branch
      %11 = sbr.rel (0) target = $region5
    $region4: #{tpu_custom_call.1} parent=1 // pred_region
      %s13 = ssub.s32 128, 128
      %14 = vsyncadd [#allocation4], %s13
      %s16 = sshll.u32 [#allocation3], 4
      %s17 = int_to_ptr.vmem [resolvable:$true] %s16
      %19 = dma.hbm_to_vmem [thread:$0]  %s0, 128, %s17, [#allocation4]
    $region5: #{tpu_custom_call.1} parent=1 // pred_fallthru
      _
    // Predicated region
    $region6: #{tpu_custom_call.1} parent=1 // pred_check
      _
    $region7: #{tpu_custom_call.1} parent=1 // pred_check_branch
      %21 = sbr.rel (0) target = $region9
    $region8: #{tpu_custom_call.1} parent=1 // pred_region
      %s22 = sadd.s32 0, 1
      %s24 = ssub.s32 128, 128
      %25 = vsyncadd [#allocation7], %s24
      %s26 = smul.addr %s22, 128
      %s27 = scalar_lea.hbm %s1, %s26
      %s29 = sshll.u32 [#allocation6], 4
      %s30 = int_to_ptr.vmem [resolvable:$true] %s29
      %32 = dma.hbm_to_vmem [thread:$0]  %s27, 128, %s30, [#allocation7]
    $region9: #{tpu_custom_call.1} parent=1 // pred_fallthru
      _
    // Predicated region
    $region10: #{tpu_custom_call.1} parent=1 // pred_check
      _
    $region11: #{tpu_custom_call.1} parent=1 // pred_check_branch
      %34 = sbr.rel (0) target = $region13
    $region12: #{tpu_custom_call.1} parent=1 // pred_region
      %35 = dma.done [#allocation4], 128
    $region13: #{tpu_custom_call.1} parent=1 // pred_fallthru
      _
    // Predicated region
    $region14: #{tpu_custom_call.1} parent=1 // pred_check
      _
    $region15: #{tpu_custom_call.1} parent=1 // pred_check_branch
      %37 = sbr.rel (0) target = $region17
    $region16: #{tpu_custom_call.1} parent=1 // pred_region
      %38 = dma.done [#allocation7], 128
    $region17: #{tpu_custom_call.1} parent=1 // pred_fallthru
      _
    %s39 = sadd.s32 0, 1
    %p40 = scmp.eq.s32.totalorder 0, 0
    // Predicated region
    $region18: #{tpu_custom_call.1} parent=1 // pred_check
      %p41 = pneg %p40
    $region19: #{tpu_custom_call.1} parent=1 // pred_check_branch
      %43 = sbr.rel (%p41) target = $region21
    $region20: #{tpu_custom_call.1} parent=1 // pred_region
      %44 = vst [vmem:[#allocation2] sm:$0xff] 0.0
    $region21: #{tpu_custom_call.1} parent=1 // pred_fallthru
      _
    %v45 = vld [vmem:[#allocation3] sm:$0xff]
    %v46 = vld [vmem:[#allocation6] sm:$0xff]
    %v47 = vsub.f32 %v46, %v45
    %v48 = vmul.f32 %v47, 1.442695
    %v49 = vpow.pop %v48
    %v50 = vadd.f32 %v49, 1.0
    %v51 = vlog2.pop %v50
    %v52 = vmul.f32 %v51, 0.6931472
    %v53 = vmul.f32 -0.5, %v49
    %v54 = vadd.f32 %v53, 1.0
    %v55 = vmul.f32 %v54, %v49
    %v56 = vand.u32 2147483647, %v49
    %vm57 = vcmp.lt.f32.partialorder %v56, 0.0004427343
    %v58 = vsel %vm57, %v55, %v52
    %v59 = vld [vmem:[#allocation2] sm:$0xff]
    %v60 = vadd.f32 %v59, %v58
    %61 = vst [vmem:[#allocation2] sm:$0xff] %v60
    // Predicated region
    $region22: #{tpu_custom_call.1} parent=1 // pred_check
      %p62 = pneg %p40
    $region23: #{tpu_custom_call.1} parent=1 // pred_check_branch
      %64 = sbr.rel (%p62) target = $region25
    $region24: #{tpu_custom_call.1} parent=1 // pred_region
      %v65 = vld [vmem:[#allocation2] sm:$0xff]
      %v66 = vrot.slane %v65, 4
      %v67 = vadd.f32 %v65, %v66
      %v68 = vrot.slane %v67, 2
      %v69 = vadd.f32 %v67, %v68
      %v70 = vrot.slane %v69, 1
      %v71 = vadd.f32 %v69, %v70
      %72 = vst [vmem:[#allocation8] sm:$0x1] %v71
    $region25: #{tpu_custom_call.1} parent=1 // pred_fallthru
      _
    // Predicated region
    $region26: #{tpu_custom_call.1} parent=1 // pred_check
      _
    $region27: #{tpu_custom_call.1} parent=1 // pred_check_branch
      %74 = sbr.rel (0) target = $region29
    $region28: #{tpu_custom_call.1} parent=1 // pred_region
      %s76 = ssub.s32 16, 16
      %77 = vsyncadd [#allocation5], %s76
      %s79 = sshll.u32 [#allocation8], 4
      %s80 = int_to_ptr.vmem [resolvable:$true] %s79
      %82 = dma.vmem_to_hbm [thread:$0]  %s80, 16, %s2, [#allocation5]
    $region29: #{tpu_custom_call.1} parent=1 // pred_fallthru
      _
    // Predicated region
    $region30: #{tpu_custom_call.1} parent=1 // pred_check
      _
    $region31: #{tpu_custom_call.1} parent=1 // pred_check_branch
      %84 = sbr.rel (0) target = $region33
    $region32: #{tpu_custom_call.1} parent=1 // pred_region
      %85 = dma.done [#allocation5], 16
    $region33: #{tpu_custom_call.1} parent=1 // pred_fallthru
      _
    %86 = vsyncpa [#allocation4], 1
    %87 = vsyncpa [#allocation7], 1
    %88 = vsyncpa [#allocation5], 1

</llo_original>
